<compile_context>
chip_gen: v7x
topology: tpu7x:2x2x1
jax: 0.10.0
libtpu: 0.0.40
codegen_flags: <defaults>
</compile_context>

<pallas_src>
import math
import functools

import jax
import jax.numpy as jnp
from jax.experimental import pallas as pl
from jax.experimental.pallas import tpu as pltpu


def _keep_threshold(p):
    """uint32 threshold t such that P(bits >= t) == 1 - p for uniform uint32 bits."""
    return min(int(round(float(p) * float(2 ** 32))), 2 ** 32 - 1)


def _posenc_dropout_kernel(x_ref, pe_ref, bits_ref, o_ref, *, batch, threshold, scale):
    """(x + pe) followed by inverted dropout, on a lane-dense (rows, batch*d_model) tile."""
    pe = pe_ref[...]                                    # (TS, D)
    if batch > 1:
        # x was flattened (S, B, D) -> (S, B*D); lane index = b*D + d, so repeat pe B times.
        pe = jnp.concatenate([pe] * batch, axis=-1)     # (TS, B*D)
    val = x_ref[...] + pe                               # compute in x's dtype (bf16 stays bf16)
    keep = bits_ref[...] >= jnp.uint32(threshold)       # raw-bit threshold compare (no float chain)
    scaled = val * jnp.asarray(scale, dtype=val.dtype)
    o_ref[...] = jnp.where(keep, scaled, jnp.zeros_like(scaled)).astype(o_ref.dtype)


def make_positional_encoding_buffer(d_model, max_len=500, dtype=jnp.float32):
    """Deterministic construction of the `pe` buffer exactly as in the PyTorch __init__."""
    position = jnp.arange(max_len, dtype=jnp.float32)[:, None]                      # (max_len, 1)
    div_term = jnp.exp(jnp.arange(0, d_model, 2, dtype=jnp.float32)
                       * (-math.log(10000.0) / d_model))                            # (d_model//2,)
    angles = position * div_term                                                    # (max_len, d_model//2)
    pe = jnp.zeros((max_len, 1, d_model), dtype=jnp.float32)
    pe = pe.at[:, 0, 0::2].set(jnp.sin(angles))
    pe = pe.at[:, 0, 1::2].set(jnp.cos(angles))
    return pe.astype(dtype)


def _pick_seq_tile(seq_len, row_bytes, target_bytes=2 << 20):
    """Rows per grid step: ~1-4 MiB x-block, second-to-last block dim a multiple of 8."""
    ts = max(1, min(seq_len, target_bytes // max(row_bytes, 1)))
    if ts >= seq_len:
        return seq_len
    ts = max(8, (ts // 8) * 8)
    return min(ts, seq_len)


def positional_encoding_forward(x, pe, *, dropout_p=0.1, key=None, training=True):
    """Pallas TPU forward of PositionalEncoding: dropout(x + pe[:S])."""
    S, B, D = x.shape
    pe_s = pe[:S, 0, :].astype(x.dtype)                  # (S, D)

    apply_dropout = bool(training) and float(dropout_p) > 0.0
    if not apply_dropout:
        # Eval / p == 0: a bare elementwise add -- let XLA fuse it; skip the
        # pallas_call custom-call boundary entirely (perf feedback).
        return x + pe_s[:, None, :]

    if key is None:
        key = jax.random.PRNGKey(0)

    p = float(dropout_p)
    threshold = _keep_threshold(p)
    scale = 1.0 / (1.0 - p)

    # Lane-dense 2D view: last dim is B*D (pure layout plumbing; reshape is free).
    x2 = x.reshape(S, B * D)
    # Precomputed uniform uint32 bits: portable across real TPU and interpret/CPU checks.
    # TODO(synk): on-TPU-only builds could use pltpu.prng_seed/prng_random_bits in-kernel
    # (seed folded with pl.program_id) to avoid this extra HBM stream; those primitives
    # have no CPU/interpret lowering, so they are avoided here.
    bits = jax.random.bits(key, (S, B * D), dtype=jnp.uint32)

    itemsize = jnp.dtype(x.dtype).itemsize
    ts = _pick_seq_tile(S, B * D * itemsize)
    grid = (pl.cdiv(S, ts),)

    # Scoped-VMEM budget: double-buffered x/bits/out blocks + pe blocks, with headroom.
    block_elems = ts * B * D
    needed = 2 * (2 * block_elems * itemsize + block_elems * 4) + 2 * ts * D * itemsize
    vmem_limit = int(min(64 * 2 ** 20, max(2 * needed, 32 * 2 ** 20)))

    kernel = functools.partial(_posenc_dropout_kernel, batch=B,
                               threshold=threshold, scale=scale)

    out2 = pl.pallas_call(
        kernel,
        out_shape=jax.ShapeDtypeStruct((S, B * D), x.dtype),
        grid=grid,
        in_specs=[
            pl.BlockSpec((ts, B * D), lambda i: (i, 0)),   # x   (flattened, lane-dense)
            pl.BlockSpec((ts, D), lambda i: (i, 0)),       # pe  (one row per position)
            pl.BlockSpec((ts, B * D), lambda i: (i, 0)),   # dropout bits
        ],
        out_specs=pl.BlockSpec((ts, B * D), lambda i: (i, 0)),
        compiler_params=pltpu.CompilerParams(
            dimension_semantics=("parallel",),   # mem-bound elementwise: megacore-shardable
            vmem_limit_bytes=vmem_limit,
        ),
    )(x2, pe_s, bits)

    return out2.reshape(S, B, D)


if __name__ == "__main__":
    # Small shapes consistent with the module: [seq_len, batch, d_model]
    S, B, D = 8, 2, 32
    root = jax.random.PRNGKey(0)
    kx, kd = jax.random.split(root)
    x = jax.random.normal(kx, (S, B, D), dtype=jnp.float32)
    pe = make_positional_encoding_buffer(d_model=D, max_len=500)

    ref_add = x + pe[:S]

    # Eval path (dropout = identity): bypasses the kernel per perf feedback.
    out_eval = jax.block_until_ready(
        positional_encoding_forward(x, pe, dropout_p=0.1, training=False))
    assert out_eval.shape == (S, B, D)
    assert jnp.allclose(out_eval, ref_add, atol=1e-6), "eval-mode mismatch"

    # Train path: Pallas kernel (add + inverted dropout with precomputed bits).
    p = 0.1
    out_train = jax.block_until_ready(
        positional_encoding_forward(x, pe, dropout_p=p, key=kd, training=True))
    assert out_train.shape == (S, B, D)

    # Deterministic reference: identical bits, threshold and scale as the kernel.
    bits = jax.random.bits(kd, (S, B * D), dtype=jnp.uint32).reshape(S, B, D)
    keep = bits >= jnp.uint32(_keep_threshold(p))
    ref_train = jnp.where(keep, ref_add * jnp.float32(1.0 / (1.0 - p)), 0.0)
    assert jnp.allclose(out_train, ref_train, atol=1e-5, rtol=1e-5), "train-mode mismatch"

    print("KERNEL_OK")
</pallas_src>

<mosaic_0001>
module attributes {stable_mosaic.version = 11 : i64} {
  func.func @_posenc_dropout_kernel(%arg0: i32, %arg1: memref<8x64xf32, #tpu.memory_space<vmem>>, %arg2: memref<8x32xf32, #tpu.memory_space<vmem>>, %arg3: memref<8x64xi32, #tpu.memory_space<vmem>>, %arg4: memref<8x64xf32, #tpu.memory_space<vmem>>) attributes {dimension_semantics = [#tpu.dimension_semantics<parallel>], iteration_bounds = array<i64: 1>, scalar_prefetch = 0 : i64, scratch_operands = 0 : i64, tpu.core_type = #tpu.core_type<tc>, window_params = [{transform_indices = @transform_0, window_bounds = array<i64: 8, 64>}, {transform_indices = @transform_1, window_bounds = array<i64: 8, 32>}, {transform_indices = @transform_2, window_bounds = array<i64: 8, 64>}, {transform_indices = @transform_3, window_bounds = array<i64: 8, 64>}]} {
    %c0 = arith.constant 0 : index
    %c0_0 = arith.constant 0 : index
    %0 = vector.load %arg2[%c0, %c0_0] : memref<8x32xf32, #tpu.memory_space<vmem>>, vector<8x32xf32>
    %1 = tpu.concatenate %0, %0 in 1 : vector<8x32xf32>, vector<8x32xf32> -> vector<8x64xf32>
    %c0_1 = arith.constant 0 : index
    %c0_2 = arith.constant 0 : index
    %2 = vector.load %arg1[%c0_1, %c0_2] : memref<8x64xf32, #tpu.memory_space<vmem>>, vector<8x64xf32>
    %3 = arith.addf %2, %1 : vector<8x64xf32>
    %c0_3 = arith.constant 0 : index
    %c0_4 = arith.constant 0 : index
    %4 = vector.load %arg3[%c0_3, %c0_4] : memref<8x64xi32, #tpu.memory_space<vmem>>, vector<8x64xi32>
    %c429496730_i32 = arith.constant 429496730 : i32
    %5 = vector.broadcast %c429496730_i32 : i32 to vector<8x64xi32>
    %6 = arith.cmpi uge, %4, %5 : vector<8x64xi32>
    %cst = arith.constant 1.11111116 : f32
    %7 = vector.broadcast %cst : f32 to vector<8x64xf32>
    %8 = arith.mulf %3, %7 : vector<8x64xf32>
    %cst_5 = arith.constant 0.000000e+00 : f32
    %9 = vector.broadcast %cst_5 : f32 to vector<8x64xf32>
    %10 = arith.select %6, %8, %9 : vector<8x64xi1>, vector<8x64xf32>
    %c0_6 = arith.constant 0 : index
    %c0_7 = arith.constant 0 : index
    %11 = vector.load %arg4[%c0_6, %c0_7] : memref<8x64xf32, #tpu.memory_space<vmem>>, vector<8x64xf32>
    tpu.vector_store %arg4[%c0_6, %c0_7], %10 {strides = array<i32>} : memref<8x64xf32, #tpu.memory_space<vmem>>, vector<8x64xf32>,
    return
  }
  func.func @transform_0(%arg0: i32) -> (i32, i32) {
    %c0_i32 = arith.constant 0 : i32
    %c0_i32_0 = arith.constant 0 : i32
    return %arg0, %c0_i32 : i32, i32
  }
  func.func @transform_1(%arg0: i32) -> (i32, i32) {
    %c0_i32 = arith.constant 0 : i32
    %c0_i32_0 = arith.constant 0 : i32
    return %arg0, %c0_i32 : i32, i32
  }
  func.func @transform_2(%arg0: i32) -> (i32, i32) {
    %c0_i32 = arith.constant 0 : i32
    %c0_i32_0 = arith.constant 0 : i32
    return %arg0, %c0_i32 : i32, i32
  }
  func.func @transform_3(%arg0: i32) -> (i32, i32) {
    %c0_i32 = arith.constant 0 : i32
    %c0_i32_0 = arith.constant 0 : i32
    return %arg0, %c0_i32 : i32, i32
  }
}

</mosaic_0001>

<llo_original>
// kernel: tpu_custom_call.1
$region0: #{tpu_custom_call.1}
  #allocation0 [shape = 'u32[]', space=smem, size = 0x4, offset = 0x4, fixed_abs, tag = 'smem constant byte address 0x4 - core index']
  #allocation1 [shape = 'u32[144,128]{1,0:T(1,128)}', space=vmem, size = 0x12000, scoped, tag = 'internal scratch']
  %s0 = inlined_call_operand.hbm [shape: f32[8,64], index: 0, kind: input, shape index: {}]
  %s1 = inlined_call_operand.hbm [shape: f32[8,32], index: 1, kind: input, shape index: {}]
  %s2 = inlined_call_operand.hbm [shape: u32[8,64], index: 2, kind: input, shape index: {}]
  %s3 = inlined_call_operand.hbm [shape: f32[8,64], index: 3, kind: output, shape index: {}]
  %s4 = sld [smem:[#allocation0]]
  $region34: #{tpu_custom_call.1} parent=0
    _
  %s6 = ssub.s32 1, %s4
  %s7 = scalar_select 0, %s6, %s4
  $region1: #{tpu_custom_call.1} parent=0
    #allocation2 [shape = 'u8[4096]{0}', space=vmem, size = 0x1000, scoped, tag = 'input window, operand 0, single buffered']
    #allocation3 [shape = 's32[1]{0}', space=sflag, size = 0x4, scoped, tag = 'scoped memory for tpu_custom_call.1']
    #allocation4 [shape = 's32[1]{0}', space=sflag, size = 0x4, scoped, tag = 'scoped memory for tpu_custom_call.1']
    #allocation5 [shape = 'u8[4096]{0}', space=vmem, size = 0x1000, scoped, tag = 'input window, operand 1, single buffered']
    #allocation6 [shape = 's32[1]{0}', space=sflag, size = 0x4, scoped, tag = 'scoped memory for tpu_custom_call.1']
    #allocation7 [shape = 'u8[4096]{0}', space=vmem, size = 0x1000, scoped, tag = 'input window, operand 2, single buffered']
    #allocation8 [shape = 'u8[4096]{0}', space=vmem, size = 0x1000, scoped, tag = 'output window, operand 0, single buffered']
    %8 = vsyncpa [#allocation3], 0
    %9 = vsyncpa [#allocation6], 0
    %10 = vsyncpa [#allocation4], 0
    // Predicated region
    $region2: #{tpu_custom_call.1} parent=1 // pred_check
      _
    $region3: #{tpu_custom_call.1} parent=1 // pred_check_branch
      %12 = sbr.rel (0) target = $region5
    $region4: #{tpu_custom_call.1} parent=1 // pred_region
      %s14 = ssub.s32 128, 128
      %15 = vsyncadd [#allocation3], %s14
      %s17 = sshll.u32 [#allocation2], 4
      %s18 = int_to_ptr.vmem [resolvable:$true] %s17
      %20 = dma.hbm_to_vmem [thread:$0]  %s0, 128, %s18, [#allocation3]
    $region5: #{tpu_custom_call.1} parent=1 // pred_fallthru
      _
    // Predicated region
    $region6: #{tpu_custom_call.1} parent=1 // pred_check
      _
    $region7: #{tpu_custom_call.1} parent=1 // pred_check_branch
      %22 = sbr.rel (0) target = $region9
    $region8: #{tpu_custom_call.1} parent=1 // pred_region
      %s24 = ssub.s32 128, 128
      %25 = vsyncadd [#allocation6], %s24
      %s27 = sshll.u32 [#allocation5], 4
      %s28 = int_to_ptr.vmem [resolvable:$true] %s27
      %30 = dma.hbm_to_vmem [thread:$0]  %s1, 128, %s28, [#allocation6]
    $region9: #{tpu_custom_call.1} parent=1 // pred_fallthru
      _
    // Predicated region
    $region10: #{tpu_custom_call.1} parent=1 // pred_check
      _
    $region11: #{tpu_custom_call.1} parent=1 // pred_check_branch
      %32 = sbr.rel (0) target = $region13
    $region12: #{tpu_custom_call.1} parent=1 // pred_region
      %s34 = ssub.s32 128, 128
      %35 = vsyncadd [#allocation6], %s34
      %s37 = sshll.u32 [#allocation7], 4
      %s38 = int_to_ptr.vmem [resolvable:$true] %s37
      %40 = dma.hbm_to_vmem [thread:$0]  %s2, 128, %s38, [#allocation6]
    $region13: #{tpu_custom_call.1} parent=1 // pred_fallthru
      _
    // Predicated region
    $region14: #{tpu_custom_call.1} parent=1 // pred_check
      _
    $region15: #{tpu_custom_call.1} parent=1 // pred_check_branch
      %42 = sbr.rel (0) target = $region17
    $region16: #{tpu_custom_call.1} parent=1 // pred_region
      %43 = dma.done [#allocation3], 128
    $region17: #{tpu_custom_call.1} parent=1 // pred_fallthru
      _
    // Predicated region
    $region18: #{tpu_custom_call.1} parent=1 // pred_check
      _
    $region19: #{tpu_custom_call.1} parent=1 // pred_check_branch
      %45 = sbr.rel (0) target = $region21
    $region20: #{tpu_custom_call.1} parent=1 // pred_region
      %46 = dma.done [#allocation6], 128
    $region21: #{tpu_custom_call.1} parent=1 // pred_fallthru
      _
    // Predicated region
    $region22: #{tpu_custom_call.1} parent=1 // pred_check
      _
    $region23: #{tpu_custom_call.1} parent=1 // pred_check_branch
      %48 = sbr.rel (0) target = $region25
    $region24: #{tpu_custom_call.1} parent=1 // pred_region
      %49 = dma.done [#allocation6], 128
    $region25: #{tpu_custom_call.1} parent=1 // pred_fallthru
      _
    %v50 = vld [vmem:[#allocation5] sm:$0xff]
    %52 = vrot.lane.b32.xlu0 %v50, 32
    %v53 = vpop.permute.xlu0 %52
    %vm55 = vcmask 261120
    %v56 = vsel %vm55, %v50, %v53
    %v57 = vld [vmem:[#allocation2] sm:$0xff]
    %v58 = vadd.f32 %v57, %v56
    %v59 = vld [vmem:[#allocation7] sm:$0xff]
    %vm60 = vcmp.ge.u32.totalorder %v59, 429496730
    %v61 = vmul.f32 %v58, 1.1111112
    %v62 = vsel %vm60, %v61, 0.0
    %vm63 = vcmask 523264
    %64 = vst.msk [vmem:[#allocation8] sm:$0xff] %vm63, %v62
    // Predicated region
    $region26: #{tpu_custom_call.1} parent=1 // pred_check
      _
    $region27: #{tpu_custom_call.1} parent=1 // pred_check_branch
      %66 = sbr.rel (0) target = $region29
    $region28: #{tpu_custom_call.1} parent=1 // pred_region
      %s68 = ssub.s32 128, 128
      %69 = vsyncadd [#allocation4], %s68
      %s71 = sshll.u32 [#allocation8], 4
      %s72 = int_to_ptr.vmem [resolvable:$true] %s71
      %74 = dma.vmem_to_hbm [thread:$0]  %s72, 128, %s3, [#allocation4]
    $region29: #{tpu_custom_call.1} parent=1 // pred_fallthru
      _
    // Predicated region
    $region30: #{tpu_custom_call.1} parent=1 // pred_check
      _
    $region31: #{tpu_custom_call.1} parent=1 // pred_check_branch
      %76 = sbr.rel (0) target = $region33
    $region32: #{tpu_custom_call.1} parent=1 // pred_region
      %77 = dma.done [#allocation4], 128
    $region33: #{tpu_custom_call.1} parent=1 // pred_fallthru
      _
    %78 = vsyncpa [#allocation3], 1
    %79 = vsyncpa [#allocation6], 1
    %80 = vsyncpa [#allocation4], 1

</llo_original>
